<compile_context>
chip_gen: v5e
topology: v5e:2x2
jax: 0.10.0
libtpu: 0.0.40
codegen_flags: <defaults>
</compile_context>

<pallas_src>
import functools

import jax
import jax.numpy as jnp
from jax import lax
from jax.experimental import pallas as pl
from jax.experimental.pallas import tpu as pltpu


def _round_up(x: int, m: int) -> int:
    return ((x + m - 1) // m) * m


def _pick_hw_tile(hw: int) -> int:
    """Largest multiple-of-128 divisor of hw that is <= max(128, min(hw // 2, 2048)).

    Multiple-of-128 keeps the feature DMA lane-dense; the cap keeps the per-chunk feat block and
    the [P, HW_tile] mask intermediate within v7x's 64 MiB (32 MiB scoped) VMEM while still giving
    >= 2 reduction steps so the feat DMA overlaps the pooling matmul.
    """
    cap = max(128, min(hw // 2, 2048))
    best = hw                      # fall back to a single un-chunked step
    t = 128
    while t <= cap:
        if hw % t == 0:
            best = t
        t += 128
    return best


def _relation_head_kernel(feat_ref, box_ref, pair_ref, wmap_ref, hmap_ref,
                          w_all_ref, b_obj_ref, b_rel_ref,
                          *out_and_scratch,
                          C, P, KO_PAD, KR_PAD, W, H, write_roi):
    if write_roi:
        obj_ref, rel_ref, roi_ref, acc_ref = out_and_scratch
    else:
        obj_ref, rel_ref, acc_ref = out_and_scratch
        roi_ref = None

    h_step = pl.program_id(1)
    Nb = feat_ref.shape[0]
    R = pair_ref.shape[1]

    boxes = box_ref[...]                                   # [Nb, P, 4] f32 (x0, y0, x1, y1)
    x0 = boxes[..., 0:1]
    y0 = boxes[..., 1:2]
    x1 = boxes[..., 2:3]
    y1 = boxes[..., 3:4]

    # ---- 1. masked pooling over this HW chunk (bf16 MXU inputs, f32 accumulation) ----------
    wmap = wmap_ref[...]                                   # [1, 1, HW_TILE] f32 (x coordinate)
    hmap = hmap_ref[...]                                   # [1, 1, HW_TILE] f32 (y coordinate)
    inside = (wmap >= x0) & (wmap < x1) & (hmap >= y0) & (hmap < y1)      # [Nb, P, HW_TILE]
    mask = inside.astype(jnp.float32).astype(jnp.bfloat16)                # exact 0/1

    partial = jnp.einsum('nph,nch->npc', mask, feat_ref[...],
                         preferred_element_type=jnp.float32)              # [Nb, P, C] f32

    @pl.when(h_step == 0)
    def _():
        acc_ref[...] = jnp.zeros_like(acc_ref)

    acc_ref[...] += partial

    # ---- finalize on the last HW chunk -------------------------------------------------------
    @pl.when(h_step == pl.num_programs(1) - 1)
    def _():
        # Analytic ROI pixel count (== mask row-sum exactly; coords clamped to the feature map).
        cx = jnp.clip(jnp.ceil(x1), 0.0, float(W)) - jnp.clip(jnp.ceil(x0), 0.0, float(W))
        cy = jnp.clip(jnp.ceil(y1), 0.0, float(H)) - jnp.clip(jnp.ceil(y0), 0.0, float(H))
        count = jnp.maximum(jnp.maximum(cx, 0.0) * jnp.maximum(cy, 0.0), 1.0)   # [Nb, P, 1]
        roi = acc_ref[...] * (1.0 / count)                                       # [Nb, P, C] f32
        if write_roi:
            roi_ref[...] = roi.astype(roi_ref.dtype)                             # bf16 writeback

        # ---- 2. fused obj / subject / object-role projection (single MXU matmul) ------------
        roi_flat = roi.reshape(Nb * P, C).astype(jnp.bfloat16)
        proj = jnp.dot(roi_flat, w_all_ref[...],
                       preferred_element_type=jnp.float32)               # [Nb*P, Ko_p + 2*Kr_p]

        obj_ref[...] = (proj[:, :KO_PAD] + b_obj_ref[...]).reshape(Nb, P, KO_PAD)

        subj_proj = proj[:, KO_PAD:KO_PAD + KR_PAD].reshape(Nb, P, KR_PAD)   # roi @ W_rs (pad)
        objf_proj = proj[:, KO_PAD + KR_PAD:].reshape(Nb, P, KR_PAD)         # roi @ W_ro (pad)
        stacked = jnp.concatenate([subj_proj, objf_proj], axis=1)            # [Nb, 2P, Kr_p]
        stacked = stacked.astype(jnp.bfloat16)

        # ---- 3 + 4. fused subject+object gather via ONE one-hot matmul ----------------------
        pairs = pair_ref[...]                                                 # [Nb, R, 2] int32
        q_iota = lax.broadcasted_iota(jnp.int32, (Nb, R, 2 * P), 2)
        onehot = (q_iota == pairs[..., 0:1]) | (q_iota == pairs[..., 1:2] + P)
        onehot = onehot.astype(jnp.float32).astype(jnp.bfloat16)              # [Nb, R, 2P]
        rel = jnp.einsum('nrq,nqk->nrk', onehot, stacked,
                         preferred_element_type=jnp.float32) + b_rel_ref[...]
        rel_ref[...] = rel


class ROIRelationHeadPallas:
    """Concrete synthetic ROIRelationHead whose forward runs as one fused Pallas kernel."""

    def __init__(self, in_channels: int, num_obj_classes: int, num_rel_classes: int,
                 key: jax.Array):
        k1, k2, k3, k4, k5 = jax.random.split(key, 5)
        scale = 1.0 / jnp.sqrt(jnp.float32(in_channels))
        self.in_channels = in_channels
        self.num_obj_classes = num_obj_classes
        self.num_rel_classes = num_rel_classes

        # raw f32 parameters (used by the plain-JAX reference)
        self.w_obj = jax.random.normal(k1, (in_channels, num_obj_classes), jnp.float32) * scale
        self.b_obj = jax.random.normal(k2, (1, num_obj_classes), jnp.float32) * 0.01
        self.w_rs = jax.random.normal(k3, (in_channels, num_rel_classes), jnp.float32) * scale
        self.w_ro = jax.random.normal(k4, (in_channels, num_rel_classes), jnp.float32) * scale
        self.b_rel = jax.random.normal(k5, (1, num_rel_classes), jnp.float32) * 0.01

        # fused, lane-padded (to 128) weights/biases built once, not per call; weights in bf16
        self.ko_pad = _round_up(num_obj_classes, 128)
        self.kr_pad = _round_up(num_rel_classes, 128)
        w_obj_p = jnp.zeros((in_channels, self.ko_pad), jnp.float32).at[:, :num_obj_classes].set(self.w_obj)
        w_rs_p = jnp.zeros((in_channels, self.kr_pad), jnp.float32).at[:, :num_rel_classes].set(self.w_rs)
        w_ro_p = jnp.zeros((in_channels, self.kr_pad), jnp.float32).at[:, :num_rel_classes].set(self.w_ro)
        self.w_all_bf16 = jnp.concatenate([w_obj_p, w_rs_p, w_ro_p], axis=1).astype(jnp.bfloat16)
        self.b_obj_pad = jnp.zeros((1, self.ko_pad), jnp.float32).at[:, :num_obj_classes].set(self.b_obj)
        self.b_rel_pad = jnp.zeros((1, self.kr_pad), jnp.float32).at[:, :num_rel_classes].set(self.b_rel)

    def forward(self, features_nchw, rel_pair_idxs, proposal_boxes,
                images_per_block=None, hw_tile=None, return_roi_feats=True):
        """
        features_nchw:  [N, C, H, W] float32 (PyTorch NCHW convention)
        rel_pair_idxs:  list of N int32 arrays [R, 2]
        proposal_boxes: list of N float32 arrays [P, 4] (x0, y0, x1, y1), feature-map coords
        Returns (refined_obj_logits_list, relation_logits_list, None, add_losses_required)
        """
        N, C, H, W = features_nchw.shape
        HW = H * W
        assert C == self.in_channels

        # NCHW-native: HW is already contiguous, so no transpose round trip through HBM.  The
        # bf16 cast would normally come for free from a bf16 backbone.
        feat = features_nchw.reshape(N, C, HW).astype(jnp.bfloat16)          # [N, C, HW]
        boxes = jnp.stack(proposal_boxes).astype(jnp.float32)                # [N, P, 4]
        pairs = jnp.stack(rel_pair_idxs).astype(jnp.int32)                   # [N, R, 2]
        P = boxes.shape[1]
        R = pairs.shape[1]

        # per-pixel coordinate maps, chunked along HW together with the features
        hw = jnp.arange(HW, dtype=jnp.int32)
        wmap = (hw % W).astype(jnp.float32).reshape(1, 1, HW)
        hmap = (hw // W).astype(jnp.float32).reshape(1, 1, HW)

        if images_per_block is None:
            # >= 2 batch grid steps when possible (software pipelining + both v7x TensorCores).
            images_per_block = 1
            for d in range(N // 2, 0, -1):
                if N % d == 0:
                    images_per_block = d
                    break
        Nb = images_per_block
        assert N % Nb == 0, "images_per_block must divide the batch size"

        if hw_tile is None:
            hw_tile = _pick_hw_tile(HW)
        assert HW % hw_tile == 0, "hw_tile must divide H*W"
        n_hw = HW // hw_tile

        ktot = self.ko_pad + 2 * self.kr_pad
        kernel = functools.partial(
            _relation_head_kernel, C=C, P=P, KO_PAD=self.ko_pad, KR_PAD=self.kr_pad,
            W=W, H=H, write_roi=return_roi_feats)

        grid = (N // Nb, n_hw)                                # HW reduction axis last
        img_blk = lambda shape: pl.BlockSpec((Nb,) + shape, lambda n, h: (n, 0, 0))
        hw_blk = lambda shape: pl.BlockSpec(shape, lambda n, h: (0, 0, h))
        full2 = lambda shape: pl.BlockSpec(shape, lambda n, h: (0, 0))

        in_specs = [
            pl.BlockSpec((Nb, C, hw_tile), lambda n, h: (n, 0, h)),   # features (bf16, lane=HW)
            img_blk((P, 4)),                                          # boxes
            img_blk((R, 2)),                                          # relation pair indices
            hw_blk((1, 1, hw_tile)),                                  # x coordinate map chunk
            hw_blk((1, 1, hw_tile)),                                  # y coordinate map chunk
            full2((C, ktot)),                                         # fused bf16 weights
            full2((1, self.ko_pad)),                                  # padded b_obj
            full2((1, self.kr_pad)),                                  # padded b_rel
        ]
        out_shape = [
            jax.ShapeDtypeStruct((N, P, self.ko_pad), jnp.float32),
            jax.ShapeDtypeStruct((N, R, self.kr_pad), jnp.float32),
        ]
        out_specs = [
            img_blk((P, self.ko_pad)),                                # lane-dense obj logits
            img_blk((R, self.kr_pad)),                                # lane-dense rel logits
        ]
        if return_roi_feats:
            out_shape.append(jax.ShapeDtypeStruct((N, P, C), jnp.bfloat16))
            out_specs.append(img_blk((P, C)))                         # bf16 roi feats (optional)

        # advisory cost hint so XLA schedules around the custom call
        flops = (2 * N * P * HW * C) + (2 * N * P * C * ktot) + (2 * N * R * 2 * P * self.kr_pad)
        bytes_accessed = (feat.size * 2 + boxes.size * 4 + pairs.size * 4
                          + self.w_all_bf16.size * 2
                          + (N * P * self.ko_pad + N * R * self.kr_pad) * 4
                          + (N * P * C * 2 if return_roi_feats else 0))

        outs = pl.pallas_call(
            kernel,
            out_shape=tuple(out_shape),
            grid=grid,
            in_specs=in_specs,
            out_specs=tuple(out_specs),
            scratch_shapes=[pltpu.VMEM((Nb, P, C), jnp.float32)],     # pooled f32 accumulator
            compiler_params=pltpu.CompilerParams(
                dimension_semantics=("parallel", "arbitrary"),
                vmem_limit_bytes=32 * 1024 * 1024),
            cost_estimate=pl.CostEstimate(flops=flops, transcendentals=0,
                                          bytes_accessed=bytes_accessed),
        )(feat, boxes, pairs, wmap, hmap, self.w_all_bf16, self.b_obj_pad, self.b_rel_pad)

        if return_roi_feats:
            obj_pad, rel_pad, roi_bf16 = outs
            add_losses_required = [roi_bf16]          # bookkeeping only -> bf16
        else:
            obj_pad, rel_pad = outs
            add_losses_required = []

        obj_logits = obj_pad[:, :, :self.num_obj_classes]
        rel_logits = rel_pad[:, :, :self.num_rel_classes]
        refined_obj_logits = [obj_logits[i] for i in range(N)]
        relation_logits = [rel_logits[i] for i in range(N)]
        refined_att_logits = None                     # this synthetic head has no attributes
        return refined_obj_logits, relation_logits, refined_att_logits, add_losses_required


def _reference_forward(head, features_nchw, rel_pair_idxs, proposal_boxes, emulate_bf16):
    """Plain-JAX reference.

    emulate_bf16=True rounds feat / roi / weights / per-branch projections to bf16 at the same
    points the kernel feeds the MXU, so only accumulation order differs (tight check).
    emulate_bf16=False is the pure-f32 semantic reference (loose sanity bound).
    """
    cast = ((lambda x: x.astype(jnp.bfloat16).astype(jnp.float32)) if emulate_bf16
            else (lambda x: x))
    N, C, H, W = features_nchw.shape
    feat = cast(jnp.transpose(features_nchw, (0, 2, 3, 1)).reshape(N, H * W, C))
    w_obj = cast(head.w_obj)
    w_rs = cast(head.w_rs)
    w_ro = cast(head.w_ro)
    hw = jnp.arange(H * W)
    hh = (hw // W).astype(jnp.float32)
    ww = (hw % W).astype(jnp.float32)
    obj_out, rel_out = [], []
    for n in range(N):
        b = proposal_boxes[n]
        mask = ((ww[None, :] >= b[:, 0:1]) & (ww[None, :] < b[:, 2:3])
                & (hh[None, :] >= b[:, 1:2]) & (hh[None, :] < b[:, 3:4])).astype(jnp.float32)
        cnt = jnp.maximum(mask.sum(axis=1, keepdims=True), 1.0)
        roi = cast((mask @ feat[n]) / cnt)
        obj_out.append(roi @ w_obj + head.b_obj)
        pr = rel_pair_idxs[n]
        subj = cast(roi @ w_rs)[pr[:, 0]]
        objf = cast(roi @ w_ro)[pr[:, 1]]
        rel_out.append(subj + objf + head.b_rel)
    return obj_out, rel_out


if __name__ == "__main__":
    key = jax.random.PRNGKey(0)
    k_feat, k_box, k_pair, k_param = jax.random.split(key, 4)

    N, C, H, W = 2, 32, 16, 16        # in_channels = 32
    P, R = 8, 12                      # proposals / relation pairs per image
    NUM_OBJ_CLASSES, NUM_REL_CLASSES = 16, 8

    features = jax.random.normal(k_feat, (N, C, H, W), jnp.float32)

    # deterministic boxes in feature-map coordinates (x0 < x1, y0 < y1)
    kx0, ky0, kdx, kdy = jax.random.split(k_box, 4)
    x0 = jax.random.uniform(kx0, (N, P, 1), minval=0.0, maxval=W / 2)
    y0 = jax.random.uniform(ky0, (N, P, 1), minval=0.0, maxval=H / 2)
    x1 = jnp.minimum(x0 + jax.random.uniform(kdx, (N, P, 1), minval=2.0, maxval=W / 2), W)
    y1 = jnp.minimum(y0 + jax.random.uniform(kdy, (N, P, 1), minval=2.0, maxval=H / 2), H)
    boxes = jnp.concatenate([x0, y0, x1, y1], axis=-1)
    proposal_boxes = [boxes[i] for i in range(N)]

    pairs = jax.random.randint(k_pair, (N, R, 2), 0, P, dtype=jnp.int32)
    rel_pair_idxs = [pairs[i] for i in range(N)]

    head = ROIRelationHeadPallas(C, NUM_OBJ_CLASSES, NUM_REL_CLASSES, k_param)

    obj_logits, rel_logits, att_logits, add_losses = head.forward(
        features, rel_pair_idxs, proposal_boxes)
    jax.block_until_ready(obj_logits)
    jax.block_until_ready(rel_logits)
    jax.block_until_ready(add_losses)

    # tight check against a reference that mirrors the kernel's bf16 MXU-input rounding,
    # plus a loose sanity bound against the pure-f32 semantic reference
    ref_obj_b, ref_rel_b = _reference_forward(head, features, rel_pair_idxs, proposal_boxes,
                                              emulate_bf16=True)
    ref_obj_f, ref_rel_f = _reference_forward(head, features, rel_pair_idxs, proposal_boxes,
                                              emulate_bf16=False)
    for i in range(N):
        assert obj_logits[i].shape == (P, NUM_OBJ_CLASSES)
        assert rel_logits[i].shape == (R, NUM_REL_CLASSES)
        assert jnp.allclose(obj_logits[i], ref_obj_b[i], atol=2e-3, rtol=2e-3)
        assert jnp.allclose(rel_logits[i], ref_rel_b[i], atol=2e-3, rtol=2e-3)
        assert jnp.allclose(obj_logits[i], ref_obj_f[i], atol=1e-1, rtol=1e-1)
        assert jnp.allclose(rel_logits[i], ref_rel_f[i], atol=1e-1, rtol=1e-1)
    assert att_logits is None
    assert add_losses[0].shape == (N, P, C) and add_losses[0].dtype == jnp.bfloat16

    print("KERNEL_OK")
</pallas_src>

<mosaic_0001>
module attributes {stable_mosaic.version = 11 : i64} {
  func.func @_relation_head_kernel(%arg0: i32, %arg1: i32, %arg2: memref<1x32x128xbf16, #tpu.memory_space<vmem>>, %arg3: memref<1x8x4xf32, #tpu.memory_space<vmem>>, %arg4: memref<1x12x2xi32, #tpu.memory_space<vmem>>, %arg5: memref<1x1x128xf32, #tpu.memory_space<vmem>>, %arg6: memref<1x1x128xf32, #tpu.memory_space<vmem>>, %arg7: memref<32x384xbf16, #tpu.memory_space<vmem>>, %arg8: memref<1x128xf32, #tpu.memory_space<vmem>>, %arg9: memref<1x128xf32, #tpu.memory_space<vmem>>, %arg10: memref<1x8x128xf32, #tpu.memory_space<vmem>>, %arg11: memref<1x12x128xf32, #tpu.memory_space<vmem>>, %arg12: memref<1x8x32xbf16, #tpu.memory_space<vmem>>, %arg13: memref<1x8x32xf32, #tpu.memory_space<vmem>>) attributes {dimension_semantics = [#tpu.dimension_semantics<parallel>, #tpu.dimension_semantics<arbitrary>], iteration_bounds = array<i64: 2, 2>, scalar_prefetch = 0 : i64, scratch_operands = 1 : i64, tpu.core_type = #tpu.core_type<tc>, window_params = [{transform_indices = @transform_0, window_bounds = array<i64: 1, 32, 128>}, {transform_indices = @transform_1, window_bounds = array<i64: 1, 8, 4>}, {transform_indices = @transform_2, window_bounds = array<i64: 1, 12, 2>}, {transform_indices = @transform_3, window_bounds = array<i64: 1, 1, 128>}, {transform_indices = @transform_4, window_bounds = array<i64: 1, 1, 128>}, {pipeline_mode = #tpu.pipeline_mode<synchronous>, transform_indices = @transform_5, window_bounds = array<i64: 32, 384>}, {pipeline_mode = #tpu.pipeline_mode<synchronous>, transform_indices = @transform_6, window_bounds = array<i64: 1, 128>}, {pipeline_mode = #tpu.pipeline_mode<synchronous>, transform_indices = @transform_7, window_bounds = array<i64: 1, 128>}, {transform_indices = @transform_8, window_bounds = array<i64: 1, 8, 128>}, {transform_indices = @transform_9, window_bounds = array<i64: 1, 12, 128>}, {transform_indices = @transform_10, window_bounds = array<i64: 1, 8, 32>}]} {
    %c0 = arith.constant 0 : index
    %c0_0 = arith.constant 0 : index
    %c0_1 = arith.constant 0 : index
    %0 = vector.load %arg3[%c0, %c0_0, %c0_1] : memref<1x8x4xf32, #tpu.memory_space<vmem>>, vector<1x8x4xf32>
    %1 = vector.extract_strided_slice %0 {offsets = [0, 0, 0], sizes = [1, 8, 1], strides = [1, 1, 1]} : vector<1x8x4xf32> to vector<1x8x1xf32>
    %2 = vector.extract_strided_slice %0 {offsets = [0, 0, 1], sizes = [1, 8, 1], strides = [1, 1, 1]} : vector<1x8x4xf32> to vector<1x8x1xf32>
    %3 = vector.extract_strided_slice %0 {offsets = [0, 0, 2], sizes = [1, 8, 1], strides = [1, 1, 1]} : vector<1x8x4xf32> to vector<1x8x1xf32>
    %4 = vector.extract_strided_slice %0 {offsets = [0, 0, 3], sizes = [1, 8, 1], strides = [1, 1, 1]} : vector<1x8x4xf32> to vector<1x8x1xf32>
    %c0_2 = arith.constant 0 : index
    %c0_3 = arith.constant 0 : index
    %c0_4 = arith.constant 0 : index
    %5 = vector.load %arg5[%c0_2, %c0_3, %c0_4] : memref<1x1x128xf32, #tpu.memory_space<vmem>>, vector<1x1x128xf32>
    %c0_5 = arith.constant 0 : index
    %c0_6 = arith.constant 0 : index
    %c0_7 = arith.constant 0 : index
    %6 = vector.load %arg6[%c0_5, %c0_6, %c0_7] : memref<1x1x128xf32, #tpu.memory_space<vmem>>, vector<1x1x128xf32>
    %7 = vector.broadcast %5 : vector<1x1x128xf32> to vector<1x8x128xf32>
    %8 = vector.broadcast %1 : vector<1x8x1xf32> to vector<1x8x128xf32>
    %9 = arith.cmpf oge, %7, %8 : vector<1x8x128xf32>
    %10 = vector.broadcast %5 : vector<1x1x128xf32> to vector<1x8x128xf32>
    %11 = vector.broadcast %3 : vector<1x8x1xf32> to vector<1x8x128xf32>
    %12 = arith.cmpf olt, %10, %11 : vector<1x8x128xf32>
    %13 = arith.andi %9, %12 : vector<1x8x128xi1>
    %14 = vector.broadcast %6 : vector<1x1x128xf32> to vector<1x8x128xf32>
    %15 = vector.broadcast %2 : vector<1x8x1xf32> to vector<1x8x128xf32>
    %16 = arith.cmpf oge, %14, %15 : vector<1x8x128xf32>
    %17 = arith.andi %13, %16 : vector<1x8x128xi1>
    %18 = vector.broadcast %6 : vector<1x1x128xf32> to vector<1x8x128xf32>
    %19 = vector.broadcast %4 : vector<1x8x1xf32> to vector<1x8x128xf32>
    %20 = arith.cmpf olt, %18, %19 : vector<1x8x128xf32>
    %21 = arith.andi %17, %20 : vector<1x8x128xi1>
    %22 = arith.extui %21 : vector<1x8x128xi1> to vector<1x8x128xi32>
    %23 = arith.sitofp %22 : vector<1x8x128xi32> to vector<1x8x128xf32>
    %24 = arith.truncf %23 : vector<1x8x128xf32> to vector<1x8x128xbf16>
    %c0_8 = arith.constant 0 : index
    %c0_9 = arith.constant 0 : index
    %c0_10 = arith.constant 0 : index
    %25 = vector.load %arg2[%c0_8, %c0_9, %c0_10] : memref<1x32x128xbf16, #tpu.memory_space<vmem>>, vector<1x32x128xbf16>
    "tpu.trace_start"() <{level = 10 : i32, message = "nph,nch->npc"}> : () -> ()
    %cst = arith.constant dense<0.000000e+00> : vector<1x8x32xf32>
    %26 = tpu.matmul %24, %25, %cst {dimension_numbers = #tpu.dot_dimension_numbers<[2], [2], [1], [1], [0, 0, 0, 1, 1, 1], [0], [0]>} : vector<1x8x128xbf16>, vector<1x32x128xbf16>, vector<1x8x32xf32> -> vector<1x8x32xf32>
    %c0_i32 = arith.constant 0 : i32
    "tpu.trace_stop"() : () -> ()
    %27 = arith.cmpi eq, %arg1, %c0_i32 : i32
    %28 = arith.extui %27 : i1 to i32
    %c0_i32_11 = arith.constant 0 : i32
    %29 = arith.cmpi ne, %28, %c0_i32_11 : i32
    scf.if %29 {
      %cst_19 = arith.constant 0.000000e+00 : f32
      %36 = vector.broadcast %cst_19 : f32 to vector<1x8x32xf32>
      %c0_20 = arith.constant 0 : index
      %c0_21 = arith.constant 0 : index
      %c0_22 = arith.constant 0 : index
      %37 = vector.load %arg13[%c0_20, %c0_21, %c0_22] : memref<1x8x32xf32, #tpu.memory_space<vmem>>, vector<1x8x32xf32>
      tpu.vector_store %arg13[%c0_20, %c0_21, %c0_22], %36 {strides = array<i32>} : memref<1x8x32xf32, #tpu.memory_space<vmem>>, vector<1x8x32xf32>,
    } else {
    }
    %c0_12 = arith.constant 0 : index
    %c0_13 = arith.constant 0 : index
    %c0_14 = arith.constant 0 : index
    %30 = vector.load %arg13[%c0_12, %c0_13, %c0_14] : memref<1x8x32xf32, #tpu.memory_space<vmem>>, vector<1x8x32xf32>
    %31 = arith.addf %30, %26 : vector<1x8x32xf32>
    %c0_15 = arith.constant 0 : index
    %c0_16 = arith.constant 0 : index
    %c0_17 = arith.constant 0 : index
    %32 = vector.load %arg13[%c0_15, %c0_16, %c0_17] : memref<1x8x32xf32, #tpu.memory_space<vmem>>, vector<1x8x32xf32>
    tpu.vector_store %arg13[%c0_15, %c0_16, %c0_17], %31 {strides = array<i32>} : memref<1x8x32xf32, #tpu.memory_space<vmem>>, vector<1x8x32xf32>,
    %c1_i32 = arith.constant 1 : i32
    %33 = arith.cmpi eq, %arg1, %c1_i32 : i32
    %34 = arith.extui %33 : i1 to i32
    %c0_i32_18 = arith.constant 0 : i32
    %35 = arith.cmpi ne, %34, %c0_i32_18 : i32
    scf.if %35 {
      %36 = math.ceil %3 : vector<1x8x1xf32>
      %cst_19 = arith.constant 0.000000e+00 : f32
      %cst_20 = arith.constant 1.600000e+01 : f32
      %37 = vector.broadcast %cst_19 : f32 to vector<1x8x1xf32>
      %38 = arith.maximumf %37, %36 : vector<1x8x1xf32>
      %39 = vector.broadcast %cst_20 : f32 to vector<1x8x1xf32>
      %40 = arith.minimumf %39, %38 : vector<1x8x1xf32>
      %41 = math.ceil %1 : vector<1x8x1xf32>
      %cst_21 = arith.constant 0.000000e+00 : f32
      %cst_22 = arith.constant 1.600000e+01 : f32
      %42 = vector.broadcast %cst_21 : f32 to vector<1x8x1xf32>
      %43 = arith.maximumf %42, %41 : vector<1x8x1xf32>
      %44 = vector.broadcast %cst_22 : f32 to vector<1x8x1xf32>
      %45 = arith.minimumf %44, %43 : vector<1x8x1xf32>
      %46 = arith.subf %40, %45 : vector<1x8x1xf32>
      %47 = math.ceil %4 : vector<1x8x1xf32>
      %cst_23 = arith.constant 0.000000e+00 : f32
      %cst_24 = arith.constant 1.600000e+01 : f32
      %48 = vector.broadcast %cst_23 : f32 to vector<1x8x1xf32>
      %49 = arith.maximumf %48, %47 : vector<1x8x1xf32>
      %50 = vector.broadcast %cst_24 : f32 to vector<1x8x1xf32>
      %51 = arith.minimumf %50, %49 : vector<1x8x1xf32>
      %52 = math.ceil %2 : vector<1x8x1xf32>
      %cst_25 = arith.constant 0.000000e+00 : f32
      %cst_26 = arith.constant 1.600000e+01 : f32
      %53 = vector.broadcast %cst_25 : f32 to vector<1x8x1xf32>
      %54 = arith.maximumf %53, %52 : vector<1x8x1xf32>
      %55 = vector.broadcast %cst_26 : f32 to vector<1x8x1xf32>
      %56 = arith.minimumf %55, %54 : vector<1x8x1xf32>
      %57 = arith.subf %51, %56 : vector<1x8x1xf32>
      %cst_27 = arith.constant 0.000000e+00 : f32
      %58 = vector.broadcast %cst_27 : f32 to vector<1x8x1xf32>
      %59 = arith.maximumf %46, %58 : vector<1x8x1xf32>
      %cst_28 = arith.constant 0.000000e+00 : f32
      %60 = vector.broadcast %cst_28 : f32 to vector<1x8x1xf32>
      %61 = arith.maximumf %57, %60 : vector<1x8x1xf32>
      %62 = arith.mulf %59, %61 : vector<1x8x1xf32>
      %cst_29 = arith.constant 1.000000e+00 : f32
      %63 = vector.broadcast %cst_29 : f32 to vector<1x8x1xf32>
      %64 = arith.maximumf %62, %63 : vector<1x8x1xf32>
      %c0_30 = arith.constant 0 : index
      %c0_31 = arith.constant 0 : index
      %c0_32 = arith.constant 0 : index
      %65 = vector.load %arg13[%c0_30, %c0_31, %c0_32] : memref<1x8x32xf32, #tpu.memory_space<vmem>>, vector<1x8x32xf32>
      %cst_33 = arith.constant 1.000000e+00 : f32
      %66 = vector.broadcast %cst_33 : f32 to vector<1x8x1xf32>
      %67 = arith.divf %66, %64 : vector<1x8x1xf32>
      %68 = vector.broadcast %67 : vector<1x8x1xf32> to vector<1x8x32xf32>
      %69 = arith.mulf %65, %68 : vector<1x8x32xf32>
      %70 = arith.truncf %69 : vector<1x8x32xf32> to vector<1x8x32xbf16>
      %c0_34 = arith.constant 0 : index
      %c0_35 = arith.constant 0 : index
      %c0_36 = arith.constant 0 : index
      %71 = vector.load %arg12[%c0_34, %c0_35, %c0_36] : memref<1x8x32xbf16, #tpu.memory_space<vmem>>, vector<1x8x32xbf16>
      tpu.vector_store %arg12[%c0_34, %c0_35, %c0_36], %70 {strides = array<i32>} : memref<1x8x32xbf16, #tpu.memory_space<vmem>>, vector<1x8x32xbf16>,
      %72 = vector.shape_cast %69 : vector<1x8x32xf32> to vector<8x32xf32>
      %73 = arith.truncf %72 : vector<8x32xf32> to vector<8x32xbf16>
      %c0_37 = arith.constant 0 : index
      %c0_38 = arith.constant 0 : index
      %74 = vector.load %arg7[%c0_37, %c0_38] : memref<32x384xbf16, #tpu.memory_space<vmem>>, vector<32x384xbf16>
      %cst_39 = arith.constant dense<0.000000e+00> : vector<8x384xf32>
      %75 = tpu.matmul %73, %74, %cst_39 {dimension_numbers = #tpu.dot_dimension_numbers<[1], [0], [0], [1], [0, 0, 1, 1], [], []>} : vector<8x32xbf16>, vector<32x384xbf16>, vector<8x384xf32> -> vector<8x384xf32>
      %76 = vector.extract_strided_slice %75 {offsets = [0, 0], sizes = [8, 128], strides = [1, 1]} : vector<8x384xf32> to vector<8x128xf32>
      %c0_40 = arith.constant 0 : index
      %c0_41 = arith.constant 0 : index
      %77 = vector.load %arg8[%c0_40, %c0_41] : memref<1x128xf32, #tpu.memory_space<vmem>>, vector<1x128xf32>
      %78 = vector.broadcast %77 : vector<1x128xf32> to vector<8x128xf32>
      %79 = arith.addf %76, %78 : vector<8x128xf32>
      %80 = vector.shape_cast %79 : vector<8x128xf32> to vector<1x8x128xf32>
      %c0_42 = arith.constant 0 : index
      %c0_43 = arith.constant 0 : index
      %c0_44 = arith.constant 0 : index
      %81 = vector.load %arg10[%c0_42, %c0_43, %c0_44] : memref<1x8x128xf32, #tpu.memory_space<vmem>>, vector<1x8x128xf32>
      tpu.vector_store %arg10[%c0_42, %c0_43, %c0_44], %80 {strides = array<i32>} : memref<1x8x128xf32, #tpu.memory_space<vmem>>, vector<1x8x128xf32>,
      %82 = vector.extract_strided_slice %75 {offsets = [0, 128], sizes = [8, 128], strides = [1, 1]} : vector<8x384xf32> to vector<8x128xf32>
      %83 = vector.shape_cast %82 : vector<8x128xf32> to vector<1x8x128xf32>
      %84 = vector.extract_strided_slice %75 {offsets = [0, 256], sizes = [8, 128], strides = [1, 1]} : vector<8x384xf32> to vector<8x128xf32>
      %85 = vector.shape_cast %84 : vector<8x128xf32> to vector<1x8x128xf32>
      %86 = tpu.concatenate %83, %85 in 1 : vector<1x8x128xf32>, vector<1x8x128xf32> -> vector<1x16x128xf32>
      %87 = arith.truncf %86 : vector<1x16x128xf32> to vector<1x16x128xbf16>
      %c0_45 = arith.constant 0 : index
      %c0_46 = arith.constant 0 : index
      %c0_47 = arith.constant 0 : index
      %88 = vector.load %arg4[%c0_45, %c0_46, %c0_47] : memref<1x12x2xi32, #tpu.memory_space<vmem>>, vector<1x12x2xi32>
      %89 = tpu.iota {dimensions = array<i32: 2>} : vector<1x12x16xi32>
      %90 = vector.extract_strided_slice %88 {offsets = [0, 0, 0], sizes = [1, 12, 1], strides = [1, 1, 1]} : vector<1x12x2xi32> to vector<1x12x1xi32>
      %91 = vector.broadcast %90 : vector<1x12x1xi32> to vector<1x12x16xi32>
      %92 = arith.cmpi eq, %89, %91 : vector<1x12x16xi32>
      %93 = vector.extract_strided_slice %88 {offsets = [0, 0, 1], sizes = [1, 12, 1], strides = [1, 1, 1]} : vector<1x12x2xi32> to vector<1x12x1xi32>
      %c8_i32 = arith.constant 8 : i32
      %94 = vector.broadcast %c8_i32 : i32 to vector<1x12x1xi32>
      %95 = arith.addi %93, %94 : vector<1x12x1xi32>
      %96 = vector.broadcast %95 : vector<1x12x1xi32> to vector<1x12x16xi32>
      %97 = arith.cmpi eq, %89, %96 : vector<1x12x16xi32>
      %98 = arith.ori %92, %97 : vector<1x12x16xi1>
      %99 = arith.extui %98 : vector<1x12x16xi1> to vector<1x12x16xi32>
      %100 = arith.sitofp %99 : vector<1x12x16xi32> to vector<1x12x16xf32>
      %101 = arith.truncf %100 : vector<1x12x16xf32> to vector<1x12x16xbf16>
      "tpu.trace_start"() <{level = 10 : i32, message = "nrq,nqk->nrk"}> : () -> ()
      %cst_48 = arith.constant dense<0.000000e+00> : vector<1x12x128xf32>
      %102 = tpu.matmul %101, %87, %cst_48 {dimension_numbers = #tpu.dot_dimension_numbers<[2], [1], [1], [2], [0, 0, 0, 1, 1, 2], [0], [0]>} : vector<1x12x16xbf16>, vector<1x16x128xbf16>, vector<1x12x128xf32> -> vector<1x12x128xf32>
      "tpu.trace_stop"() : () -> ()
      %c0_49 = arith.constant 0 : index
      %c0_50 = arith.constant 0 : index
      %103 = vector.load %arg9[%c0_49, %c0_50] : memref<1x128xf32, #tpu.memory_space<vmem>>, vector<1x128xf32>
      %104 = vector.shape_cast %103 : vector<1x128xf32> to vector<1x1x128xf32>
      %105 = vector.broadcast %104 : vector<1x1x128xf32> to vector<1x12x128xf32>
      %106 = arith.addf %102, %105 : vector<1x12x128xf32>
      %c0_51 = arith.constant 0 : index
      %c0_52 = arith.constant 0 : index
      %c0_53 = arith.constant 0 : index
      %107 = vector.load %arg11[%c0_51, %c0_52, %c0_53] : memref<1x12x128xf32, #tpu.memory_space<vmem>>, vector<1x12x128xf32>
      tpu.vector_store %arg11[%c0_51, %c0_52, %c0_53], %106 {strides = array<i32>} : memref<1x12x128xf32, #tpu.memory_space<vmem>>, vector<1x12x128xf32>,
    } else {
    }
    return
  }
  func.func @transform_0(%arg0: i32, %arg1: i32) -> (i32, i32, i32) {
    %c0_i32 = arith.constant 0 : i32
    %c0_i32_0 = arith.constant 0 : i32
    return %arg0, %c0_i32, %arg1 : i32, i32, i32
  }
  func.func @transform_1(%arg0: i32, %arg1: i32) -> (i32, i32, i32) {
    %c0_i32 = arith.constant 0 : i32
    %c0_i32_0 = arith.constant 0 : i32
    %c0_i32_1 = arith.constant 0 : i32
    return %arg0, %c0_i32, %c0_i32_0 : i32, i32, i32
  }
  func.func @transform_2(%arg0: i32, %arg1: i32) -> (i32, i32, i32) {
    %c0_i32 = arith.constant 0 : i32
    %c0_i32_0 = arith.constant 0 : i32
    %c0_i32_1 = arith.constant 0 : i32
    return %arg0, %c0_i32, %c0_i32_0 : i32, i32, i32
  }
  func.func @transform_3(%arg0: i32, %arg1: i32) -> (i32, i32, i32) {
    %c0_i32 = arith.constant 0 : i32
    %c0_i32_0 = arith.constant 0 : i32
    %c0_i32_1 = arith.constant 0 : i32
    return %c0_i32, %c0_i32_0, %arg1 : i32, i32, i32
  }
  func.func @transform_4(%arg0: i32, %arg1: i32) -> (i32, i32, i32) {
    %c0_i32 = arith.constant 0 : i32
    %c0_i32_0 = arith.constant 0 : i32
    %c0_i32_1 = arith.constant 0 : i32
    return %c0_i32, %c0_i32_0, %arg1 : i32, i32, i32
  }
  func.func @transform_5(%arg0: i32, %arg1: i32) -> (i32, i32) {
    %c0_i32 = arith.constant 0 : i32
    %c0_i32_0 = arith.constant 0 : i32
    %c0_i32_1 = arith.constant 0 : i32
    return %c0_i32, %c0_i32_0 : i32, i32
  }
  func.func @transform_6(%arg0: i32, %arg1: i32) -> (i32, i32) {
    %c0_i32 = arith.constant 0 : i32
    %c0_i32_0 = arith.constant 0 : i32
    %c0_i32_1 = arith.constant 0 : i32
    return %c0_i32, %c0_i32_0 : i32, i32
  }
  func.func @transform_7(%arg0: i32, %arg1: i32) -> (i32, i32) {
    %c0_i32 = arith.constant 0 : i32
    %c0_i32_0 = arith.constant 0 : i32
    %c0_i32_1 = arith.constant 0 : i32
    return %c0_i32, %c0_i32_0 : i32, i32
  }
  func.func @transform_8(%arg0: i32, %arg1: i32) -> (i32, i32, i32) {
    %c0_i32 = arith.constant 0 : i32
    %c0_i32_0 = arith.constant 0 : i32
    %c0_i32_1 = arith.constant 0 : i32
    return %arg0, %c0_i32, %c0_i32_0 : i32, i32, i32
  }
  func.func @transform_9(%arg0: i32, %arg1: i32) -> (i32, i32, i32) {
    %c0_i32 = arith.constant 0 : i32
    %c0_i32_0 = arith.constant 0 : i32
    %c0_i32_1 = arith.constant 0 : i32
    return %arg0, %c0_i32, %c0_i32_0 : i32, i32, i32
  }
  func.func @transform_10(%arg0: i32, %arg1: i32) -> (i32, i32, i32) {
    %c0_i32 = arith.constant 0 : i32
    %c0_i32_0 = arith.constant 0 : i32
    %c0_i32_1 = arith.constant 0 : i32
    return %arg0, %c0_i32, %c0_i32_0 : i32, i32, i32
  }
}

</mosaic_0001>

<llo_original>
// kernel: tpu_custom_call.1
$region0: #{tpu_custom_call.1}
  #allocation0 [shape = 'u32[]', space=smem, size = 0x4, offset = 0x4, fixed_abs, tag = 'smem constant byte address 0x4 - core index']
  #allocation1 [shape = 'u32[72,128]{1,0:T(1,128)}', space=vmem, size = 0x9000, scoped, tag = 'internal scratch']
  #allocation2 [shape = 'f32[1,8,32]{2,1,0:T(8,128)}', space=vmem, size = 0x1000, scoped, tag = 'scratch operand']
  %s0 = inlined_call_operand.hbm [shape: bf16[2,32,256], index: 0, kind: input, shape index: {}]
  %s1 = inlined_call_operand.vmem [shape: f32[2,8,4], index: 1, kind: input, shape index: {}]
  %s2 = inlined_call_operand.vmem [shape: s32[2,12,2], index: 2, kind: input, shape index: {}]
  %s3 = inlined_call_operand.vmem [shape: f32[1,1,256], index: 3, kind: input, shape index: {}]
  %s4 = inlined_call_operand.vmem [shape: f32[1,1,256], index: 4, kind: input, shape index: {}]
  %s5 = inlined_call_operand.vmem [shape: bf16[32,384], index: 5, kind: input, shape index: {}]
  %s6 = inlined_call_operand.vmem [shape: f32[1,128], index: 6, kind: input, shape index: {}]
  %s7 = inlined_call_operand.vmem [shape: f32[1,128], index: 7, kind: input, shape index: {}]
  %s8 = inlined_call_operand.hbm [shape: f32[2,8,128], index: 8, kind: output, shape index: {0}]
  %s9 = inlined_call_operand.vmem [shape: f32[2,12,128], index: 9, kind: output, shape index: {1}]
  %s10 = inlined_call_operand.hbm [shape: bf16[2,8,32], index: 10, kind: output, shape index: {2}]
  %11 = xla_tuple %s8, %s9, %s10
  %s12 = sld [smem:[#allocation0]]
  $region93: #{tpu_custom_call.1} parent=0
    _
  %s14 = ssub.s32 1, %s12
  %s15 = scalar_select 0, %s14, %s12
  $region1: #{tpu_custom_call.1} parent=0
    #allocation3 [shape = 'u8[16384]{0}', space=vmem, size = 0x4000, scoped, tag = 'input window, operand 0']
    #allocation4 [shape = 's32[2]{0}', space=sflag, size = 0x8, scoped, tag = 'scoped memory for tpu_custom_call.1']
    #allocation5 [shape = 's32[2]{0}', space=sflag, size = 0x8, scoped, tag = 'scoped memory for tpu_custom_call.1']
    #allocation6 [shape = 'u8[8192]{0}', space=vmem, size = 0x2000, scoped, tag = 'output window, operand 0']
    #allocation7 [shape = 'u8[4096]{0}', space=vmem, size = 0x1000, scoped, tag = 'output window, operand 2']
    #allocation8 [shape = 's32[2]{0}', space=sflag, size = 0x8, scoped, tag = 'scoped memory for tpu_custom_call.1']
    %16 = vsyncpa [#allocation4], 0
    %s17 = scalar_lea.sflag [#allocation4], 1
    %18 = vsyncpa %s17, 0
    %19 = vsyncpa [#allocation5], 0
    %s20 = scalar_lea.sflag [#allocation5], 1
    %21 = vsyncpa %s20, 0
    %22 = vsyncpa [#allocation8], 0
    %s23 = scalar_lea.sflag [#allocation8], 1
    %24 = vsyncpa %s23, 0
    loop: start=0, step=1, limit=6
    $region2: #{tpu_custom_call.1} parent=1 // loop_pre_header
      _
    $region3: #{tpu_custom_call.1} parent=1 // loop_header
      %s26 = sphi 0, %s30
      %p27 = scmp.ge.s32.totalorder %s26, 6
      %s33 = sphi 0, %s45
      %s34 = sphi 0, %s41
      %s35 = sphi 0, %s33
      %s36 = sphi 0, %s34
      %s37 = sphi 0, %s35
      %s38 = sphi 0, %s36
      %s50 = sphi 0, %s52
      %s53 = sphi 0, %s50
      %s54 = sphi 0, %s53
      %s70 = sphi 0, %s54
      %s76 = sphi 0, %s78
      %s79 = sphi 0, %s76
      %s80 = sphi 0, %s79
      %s96 = sphi 0, %s80
      %s102 = sphi 0, %s104
      %s105 = sphi 0, %s102
      %s106 = sphi 0, %s105
      %s122 = sphi 0, %s106
      %s128 = sphi 0, %s130
      %s131 = sphi 0, %s128
      %s132 = sphi 0, %s131
      %s148 = sphi 0, %s132
      %s154 = sphi 0, %s156
      %s157 = sphi 0, %s154
      %s158 = sphi 0, %s157
      %s174 = sphi 0, %s158
      %s178 = sphi 0, %s178
      %s180 = sphi 0, %s178
      %s181 = sphi 0, %s180
      %s195 = sphi 0, %s181
      %s199 = sphi 0, %s199
      %s201 = sphi 0, %s199
      %s202 = sphi 0, %s201
      %s216 = sphi 0, %s202
      %s220 = sphi 0, %s220
      %s222 = sphi 0, %s220
      %s223 = sphi 0, %s222
      %s237 = sphi 0, %s223
      %s243 = sphi 0, %s245
      %s246 = sphi 0, %s243
      %s247 = sphi 0, %s246
      %s263 = sphi 0, %s247
      %s269 = sphi 0, %s271
      %s272 = sphi 0, %s269
      %s273 = sphi 0, %s272
      %s289 = sphi 0, %s273
      %s295 = sphi 0, %s297
      %s298 = sphi 0, %s295
      %s299 = sphi 0, %s298
      %s315 = sphi 0, %s299
    $region4: #{tpu_custom_call.1} parent=1 // loop_header_branch
      %29 = sbr.rel (%p27) target = $region8
    $region5: #{tpu_custom_call.1} parent=1 // loop_body
      %s31 = ssub.s32 %s26, 1
      %s32 = ssub.s32 %s26, 2
      %s39 = sadd.s32 1, %s34
      %p40 = scmp.ge.s32.totalorder %s39, 2
      %s41 = scalar_select %p40, 0, %s39
      %s42 = sadd.s32 1, %s33
      %s43 = scalar_select %p40, %s42, %s33
      %p44 = scmp.ge.s32.totalorder %s43, 2
      %s45 = scalar_select %p44, 0, %s43
      %s46 = ssub.s32 %s33, %s45
      %s47 = ssub.s32 %s34, %s41
      %s48 = sor.u32 %s46, %s47
      %p49 = scmp.eq.s32.totalorder %s48, 0
      %s51 = sadd.s32 %s50, 1
      %s52 = scalar_select %p49, %s50, %s51
      %p55 = pneg %p49
      %p56 = scmp.eq.s32.totalorder %s26, 3
      %p57 = por %p55, %p56
      %p58 = scmp.ne.s32.totalorder %s50, %s53
      %p59 = scmp.eq.s32.totalorder %s26, 0
      %p60 = por %p58, %p59
      %p61 = scmp.ne.s32.totalorder %s50, %s53
      %p62 = scmp.eq.s32.totalorder %s31, 3
      %p63 = por %p61, %p62
      %p64 = scmp.ne.s32.totalorder %s53, %s54
      %p65 = scmp.eq.s32.totalorder %s31, 0
      %p66 = por %p64, %p65
      %p67 = scmp.ne.s32.totalorder %s53, %s54
      %p68 = scmp.eq.s32.totalorder %s32, 3
      %p69 = por %p67, %p68
      %p71 = scmp.ne.s32.totalorder %s54, %s70
      %p72 = scmp.eq.s32.totalorder %s32, 0
      %p73 = por %p71, %p72
      %s74 = ssub.s32 %s33, %s45
      %p75 = scmp.eq.s32.totalorder %s74, 0
      %s77 = sadd.s32 %s76, 1
      %s78 = scalar_select %p75, %s76, %s77
      %p81 = pneg %p75
      %p82 = scmp.eq.s32.totalorder %s26, 3
      %p83 = por %p81, %p82
      %p84 = scmp.ne.s32.totalorder %s76, %s79
      %p85 = scmp.eq.s32.totalorder %s26, 0
      %p86 = por %p84, %p85
      %p87 = scmp.ne.s32.totalorder %s76, %s79
      %p88 = scmp.eq.s32.totalorder %s31, 3
      %p89 = por %p87, %p88
      %p90 = scmp.ne.s32.totalorder %s79, %s80
      %p91 = scmp.eq.s32.totalorder %s31, 0
      %p92 = por %p90, %p91
      %p93 = scmp.ne.s32.totalorder %s79, %s80
      %p94 = scmp.eq.s32.totalorder %s32, 3
      %p95 = por %p93, %p94
      %p97 = scmp.ne.s32.totalorder %s80, %s96
      %p98 = scmp.eq.s32.totalorder %s32, 0
      %p99 = por %p97, %p98
      %s100 = ssub.s32 %s33, %s45
      %p101 = scmp.eq.s32.totalorder %s100, 0
      %s103 = sadd.s32 %s102, 1
      %s104 = scalar_select %p101, %s102, %s103
      %p107 = pneg %p101
      %p108 = scmp.eq.s32.totalorder %s26, 3
      %p109 = por %p107, %p108
      %p110 = scmp.ne.s32.totalorder %s102, %s105
      %p111 = scmp.eq.s32.totalorder %s26, 0
      %p112 = por %p110, %p111
      %p113 = scmp.ne.s32.totalorder %s102, %s105
      %p114 = scmp.eq.s32.totalorder %s31, 3
      %p115 = por %p113, %p114
      %p116 = scmp.ne.s32.totalorder %s105, %s106
      %p117 = scmp.eq.s32.totalorder %s31, 0
      %p118 = por %p116, %p117
      %p119 = scmp.ne.s32.totalorder %s105, %s106
      %p120 = scmp.eq.s32.totalorder %s32, 3
      %p121 = por %p119, %p120
      %p123 = scmp.ne.s32.totalorder %s106, %s122
      %p124 = scmp.eq.s32.totalorder %s32, 0
      %p125 = por %p123, %p124
      %s126 = ssub.s32 %s34, %s41
      %p127 = scmp.eq.s32.totalorder %s126, 0
      %s129 = sadd.s32 %s128, 1
      %s130 = scalar_select %p127, %s128, %s129
      %p133 = pneg %p127
      %p134 = scmp.eq.s32.totalorder %s26, 3
      %p135 = por %p133, %p134
      %p136 = scmp.ne.s32.totalorder %s128, %s131
      %p137 = scmp.eq.s32.totalorder %s26, 0
      %p138 = por %p136, %p137
      %p139 = scmp.ne.s32.totalorder %s128, %s131
      %p140 = scmp.eq.s32.totalorder %s31, 3
      %p141 = por %p139, %p140
      %p142 = scmp.ne.s32.totalorder %s131, %s132
      %p143 = scmp.eq.s32.totalorder %s31, 0
      %p144 = por %p142, %p143
      %p145 = scmp.ne.s32.totalorder %s131, %s132
      %p146 = scmp.eq.s32.totalorder %s32, 3
      %p147 = por %p145, %p146
      %p149 = scmp.ne.s32.totalorder %s132, %s148
      %p150 = scmp.eq.s32.totalorder %s32, 0
      %p151 = por %p149, %p150
      %s152 = ssub.s32 %s34, %s41
      %p153 = scmp.eq.s32.totalorder %s152, 0
      %s155 = sadd.s32 %s154, 1
      %s156 = scalar_select %p153, %s154, %s155
      %p159 = pneg %p153
      %p160 = scmp.eq.s32.totalorder %s26, 3
      %p161 = por %p159, %p160
      %p162 = scmp.ne.s32.totalorder %s154, %s157
      %p163 = scmp.eq.s32.totalorder %s26, 0
      %p164 = por %p162, %p163
      %p165 = scmp.ne.s32.totalorder %s154, %s157
      %p166 = scmp.eq.s32.totalorder %s31, 3
      %p167 = por %p165, %p166
      %p168 = scmp.ne.s32.totalorder %s157, %s158
      %p169 = scmp.eq.s32.totalorder %s31, 0
      %p170 = por %p168, %p169
      %p171 = scmp.ne.s32.totalorder %s157, %s158
      %p172 = scmp.eq.s32.totalorder %s32, 3
      %p173 = por %p171, %p172
      %p175 = scmp.ne.s32.totalorder %s158, %s174
      %p176 = scmp.eq.s32.totalorder %s32, 0
      %p177 = por %p175, %p176
      %s179 = sadd.s32 %s178, 1
      %p182 = scmp.eq.s32.totalorder %s26, 3
      %p183 = scmp.ne.s32.totalorder %s178, %s180
      %p184 = scmp.eq.s32.totalorder %s26, 0
      %p185 = por %p183, %p184
      %p186 = scmp.ne.s32.totalorder %s178, %s180
      %p187 = scmp.eq.s32.totalorder %s31, 3
      %p188 = por %p186, %p187
      %p189 = scmp.ne.s32.totalorder %s180, %s181
      %p190 = scmp.eq.s32.totalorder %s31, 0
      %p191 = por %p189, %p190
      %p192 = scmp.ne.s32.totalorder %s180, %s181
      %p193 = scmp.eq.s32.totalorder %s32, 3
      %p194 = por %p192, %p193
      %p196 = scmp.ne.s32.totalorder %s181, %s195
      %p197 = scmp.eq.s32.totalorder %s32, 0
      %p198 = por %p196, %p197
      %s200 = sadd.s32 %s199, 1
      %p203 = scmp.eq.s32.totalorder %s26, 3
      %p204 = scmp.ne.s32.totalorder %s199, %s201
      %p205 = scmp.eq.s32.totalorder %s26, 0
      %p206 = por %p204, %p205
      %p207 = scmp.ne.s32.totalorder %s199, %s201
      %p208 = scmp.eq.s32.totalorder %s31, 3
      %p209 = por %p207, %p208
      %p210 = scmp.ne.s32.totalorder %s201, %s202
      %p211 = scmp.eq.s32.totalorder %s31, 0
      %p212 = por %p210, %p211
      %p213 = scmp.ne.s32.totalorder %s201, %s202
      %p214 = scmp.eq.s32.totalorder %s32, 3
      %p215 = por %p213, %p214
      %p217 = scmp.ne.s32.totalorder %s202, %s216
      %p218 = scmp.eq.s32.totalorder %s32, 0
      %p219 = por %p217, %p218
      %s221 = sadd.s32 %s220, 1
      %p224 = scmp.eq.s32.totalorder %s26, 3
      %p225 = scmp.ne.s32.totalorder %s220, %s222
      %p226 = scmp.eq.s32.totalorder %s26, 0
      %p227 = por %p225, %p226
      %p228 = scmp.ne.s32.totalorder %s220, %s222
      %p229 = scmp.eq.s32.totalorder %s31, 3
      %p230 = por %p228, %p229
      %p231 = scmp.ne.s32.totalorder %s222, %s223
      %p232 = scmp.eq.s32.totalorder %s31, 0
      %p233 = por %p231, %p232
      %p234 = scmp.ne.s32.totalorder %s222, %s223
      %p235 = scmp.eq.s32.totalorder %s32, 3
      %p236 = por %p234, %p235
      %p238 = scmp.ne.s32.totalorder %s223, %s237
      %p239 = scmp.eq.s32.totalorder %s32, 0
      %p240 = por %p238, %p239
      %s241 = ssub.s32 %s33, %s45
      %p242 = scmp.eq.s32.totalorder %s241, 0
      %s244 = sadd.s32 %s243, 1
      %s245 = scalar_select %p242, %s243, %s244
      %p248 = pneg %p242
      %p249 = scmp.eq.s32.totalorder %s26, 3
      %p250 = por %p248, %p249
      %p251 = scmp.ne.s32.totalorder %s243, %s246
      %p252 = scmp.eq.s32.totalorder %s26, 0
      %p253 = por %p251, %p252
      %p254 = scmp.ne.s32.totalorder %s243, %s246
      %p255 = scmp.eq.s32.totalorder %s31, 3
      %p256 = por %p254, %p255
      %p257 = scmp.ne.s32.totalorder %s246, %s247
      %p258 = scmp.eq.s32.totalorder %s31, 0
      %p259 = por %p257, %p258
      %p260 = scmp.ne.s32.totalorder %s246, %s247
      %p261 = scmp.eq.s32.totalorder %s32, 3
      %p262 = por %p260, %p261
      %p264 = scmp.ne.s32.totalorder %s247, %s263
      %p265 = scmp.eq.s32.totalorder %s32, 0
      %p266 = por %p264, %p265
      %s267 = ssub.s32 %s33, %s45
      %p268 = scmp.eq.s32.totalorder %s267, 0
      %s270 = sadd.s32 %s269, 1
      %s271 = scalar_select %p268, %s269, %s270
      %p274 = pneg %p268
      %p275 = scmp.eq.s32.totalorder %s26, 3
      %p276 = por %p274, %p275
      %p277 = scmp.ne.s32.totalorder %s269, %s272
      %p278 = scmp.eq.s32.totalorder %s26, 0
      %p279 = por %p277, %p278
      %p280 = scmp.ne.s32.totalorder %s269, %s272
      %p281 = scmp.eq.s32.totalorder %s31, 3
      %p282 = por %p280, %p281
      %p283 = scmp.ne.s32.totalorder %s272, %s273
      %p284 = scmp.eq.s32.totalorder %s31, 0
      %p285 = por %p283, %p284
      %p286 = scmp.ne.s32.totalorder %s272, %s273
      %p287 = scmp.eq.s32.totalorder %s32, 3
      %p288 = por %p286, %p287
      %p290 = scmp.ne.s32.totalorder %s273, %s289
      %p291 = scmp.eq.s32.totalorder %s32, 0
      %p292 = por %p290, %p291
      %s293 = ssub.s32 %s33, %s45
      %p294 = scmp.eq.s32.totalorder %s293, 0
      %s296 = sadd.s32 %s295, 1
      %s297 = scalar_select %p294, %s295, %s296
      %p300 = pneg %p294
      %p301 = scmp.eq.s32.totalorder %s26, 3
      %p302 = por %p300, %p301
      %p303 = scmp.ne.s32.totalorder %s295, %s298
      %p304 = scmp.eq.s32.totalorder %s26, 0
      %p305 = por %p303, %p304
      %p306 = scmp.ne.s32.totalorder %s295, %s298
      %p307 = scmp.eq.s32.totalorder %s31, 3
      %p308 = por %p306, %p307
      %p309 = scmp.ne.s32.totalorder %s298, %s299
      %p310 = scmp.eq.s32.totalorder %s31, 0
      %p311 = por %p309, %p310
      %p312 = scmp.ne.s32.totalorder %s298, %s299
      %p313 = scmp.eq.s32.totalorder %s32, 3
      %p314 = por %p312, %p313
      %p316 = scmp.ne.s32.totalorder %s299, %s315
      %p317 = scmp.eq.s32.totalorder %s32, 0
      %p318 = por %p316, %p317
      %p319 = scmp.le.s32.totalorder 1, %s26
      %p320 = scmp.lt.s32.totalorder %s26, 5
      %p321 = pnand %p319, %p320
      %p322 = pneg %p321
      // Predicated region
      $region9: #{tpu_custom_call.1} parent=5 // pred_check
        _
      $region10: #{tpu_custom_call.1} parent=5 // pred_check_branch
        %324 = sbr.rel (%p321) target = $region12
      $region11: #{tpu_custom_call.1} parent=5 // pred_region
        %s325 = ssub.s32 %s26, 1
        // Predicated region
        $region13: #{tpu_custom_call.1} parent=11 // pred_check
          %p326 = pneg %p191
        $region14: #{tpu_custom_call.1} parent=11 // pred_check_branch
          %328 = sbr.rel (%p326) target = $region16
        $region15: #{tpu_custom_call.1} parent=11 // pred_region
          _
        $region16: #{tpu_custom_call.1} parent=11 // pred_fallthru
          _
        // Predicated region
        $region17: #{tpu_custom_call.1} parent=11 // pred_check
          %p329 = pneg %p212
        $region18: #{tpu_custom_call.1} parent=11 // pred_check_branch
          %331 = sbr.rel (%p329) target = $region20
        $region19: #{tpu_custom_call.1} parent=11 // pred_region
          _
        $region20: #{tpu_custom_call.1} parent=11 // pred_fallthru
          _
        // Predicated region
        $region21: #{tpu_custom_call.1} parent=11 // pred_check
          %p332 = pneg %p233
        $region22: #{tpu_custom_call.1} parent=11 // pred_check_branch
          %334 = sbr.rel (%p332) target = $region24
        $region23: #{tpu_custom_call.1} parent=11 // pred_region
          _
        $region24: #{tpu_custom_call.1} parent=11 // pred_fallthru
          _
      $region12: #{tpu_custom_call.1} parent=5 // pred_fallthru
        _
      %p335 = scmp.lt.s32.totalorder %s26, 4
      // Predicated region
      $region25: #{tpu_custom_call.1} parent=5 // pred_check
        %p336 = pneg %p335
      $region26: #{tpu_custom_call.1} parent=5 // pred_check_branch
        %338 = sbr.rel (%p336) target = $region28
      $region27: #{tpu_custom_call.1} parent=5 // pred_region
        // Predicated region
        $region29: #{tpu_custom_call.1} parent=27 // pred_check
          %p339 = pneg %p60
        $region30: #{tpu_custom_call.1} parent=27 // pred_check_branch
          %341 = sbr.rel (%p339) target = $region32
        $region31: #{tpu_custom_call.1} parent=27 // pred_region
          %s342 = sand.u32 %s50, 1
          %s343 = scalar_lea.sflag [#allocation4], %s342
          %s344 = sand.u32 %s50, 1
          %s345 = smul.addr %s344, 16
          %s346 = scalar_lea.vmem [#allocation3], %s345
          %348 = vsyncadd %s343, 0
          %s349 = smul.addr %s33, 8
          %s350 = sadd.s32 %s34, %s349
          %s351 = smul.addr %s350, 4
          %s352 = scalar_lea.hbm %s0, %s351
          %s353 = sshll.u32 %s352, 4
          %s354 = int_to_ptr.hbm [resolvable:$true] %s353
          %s355 = sshll.u32 %s346, 4
          %s356 = int_to_ptr.vmem [resolvable:$true] %s355
          %361 = dma.hbm_to_vmem [thread:$0]  %s354, 256, %s356, %s343, 128, 64, 4
        $region32: #{tpu_custom_call.1} parent=27 // pred_fallthru
          _
        // Predicated region
        $region33: #{tpu_custom_call.1} parent=27 // pred_check
          %p362 = pneg %p86
        $region34: #{tpu_custom_call.1} parent=27 // pred_check_branch
          %364 = sbr.rel (%p362) target = $region36
        $region35: #{tpu_custom_call.1} parent=27 // pred_region
          %p365 = scmp.lt.s32.totalorder %s33, 1
          %s366 = scalar_select %p365, %s33, 1
          %s367 = smul.addr %s366, 8
          %s368 = scalar_lea.vmem %s1, %s367
        $region36: #{tpu_custom_call.1} parent=27 // pred_fallthru
          _
        // Predicated region
        $region37: #{tpu_custom_call.1} parent=27 // pred_check
          %p369 = pneg %p112
        $region38: #{tpu_custom_call.1} parent=27 // pred_check_branch
          %371 = sbr.rel (%p369) target = $region40
        $region39: #{tpu_custom_call.1} parent=27 // pred_region
          %p372 = scmp.lt.s32.totalorder %s33, 1
          %s373 = scalar_select %p372, %s33, 1
          %s374 = smul.addr %s373, 2
          %s375 = smul.addr %s374, 8
          %s376 = scalar_lea.vmem %s2, %s375
        $region40: #{tpu_custom_call.1} parent=27 // pred_fallthru
          _
        // Predicated region
        $region41: #{tpu_custom_call.1} parent=27 // pred_check
          %p377 = pneg %p138
        $region42: #{tpu_custom_call.1} parent=27 // pred_check_branch
          %379 = sbr.rel (%p377) target = $region44
        $region43: #{tpu_custom_call.1} parent=27 // pred_region
          %p380 = scmp.lt.s32.totalorder %s34, 1
          %s381 = scalar_select %p380, %s34, 1
          %s382 = scalar_lea.vmem %s3, %s381
        $region44: #{tpu_custom_call.1} parent=27 // pred_fallthru
          _
        // Predicated region
        $region45: #{tpu_custom_call.1} parent=27 // pred_check
          %p383 = pneg %p164
        $region46: #{tpu_custom_call.1} parent=27 // pred_check_branch
          %385 = sbr.rel (%p383) target = $region48
        $region47: #{tpu_custom_call.1} parent=27 // pred_region
          %p386 = scmp.lt.s32.totalorder %s34, 1
          %s387 = scalar_select %p386, %s34, 1
          %s388 = scalar_lea.vmem %s4, %s387
        $region48: #{tpu_custom_call.1} parent=27 // pred_fallthru
          _
      $region28: #{tpu_custom_call.1} parent=5 // pred_fallthru
        _
      %p389 = scmp.le.s32.totalorder 1, %s26
      %p390 = scmp.lt.s32.totalorder %s26, 5
      %p391 = pnand %p389, %p390
      %p392 = pneg %p391
      // Predicated region
      $region49: #{tpu_custom_call.1} parent=5 // pred_check
        _
      $region50: #{tpu_custom_call.1} parent=5 // pred_check_branch
        %394 = sbr.rel (%p391) target = $region52
      $region51: #{tpu_custom_call.1} parent=5 // pred_region
        %s395 = ssub.s32 %s26, 1
        %s396 = sand.u32 %s53, 1
        %s397 = scalar_lea.sflag [#allocation4], %s396
        %s398 = sand.u32 %s53, 1
        %s399 = smul.addr %s398, 16
        %s400 = scalar_lea.vmem [#allocation3], %s399
        // Predicated region
        $region53: #{tpu_custom_call.1} parent=51 // pred_check
          %p401 = pneg %p66
        $region54: #{tpu_custom_call.1} parent=51 // pred_check_branch
          %403 = sbr.rel (%p401) target = $region56
        $region55: #{tpu_custom_call.1} parent=51 // pred_region
          %405 = dma.done %s397, 256
        $region56: #{tpu_custom_call.1} parent=51 // pred_fallthru
          _
        %s406 = sand.u32 %s53, 1
        %s407 = scalar_lea.sflag [#allocation4], %s406
        %s408 = sand.u32 %s53, 1
        %s409 = smul.addr %s408, 16
        %s410 = scalar_lea.vmem [#allocation3], %s409
        %p411 = pneg %p66
        %p412 = pneg %p63
        %p413 = scmp.lt.s32.totalorder %s35, 1
        %s414 = scalar_select %p413, %s35, 1
        %s415 = smul.addr %s414, 8
        %s416 = scalar_lea.vmem %s1, %s415
        %p417 = pneg %p92
        %p418 = pneg %p89
        %p419 = scmp.lt.s32.totalorder %s35, 1
        %s420 = scalar_select %p419, %s35, 1
        %s421 = smul.addr %s420, 2
        %s422 = smul.addr %s421, 8
        %s423 = scalar_lea.vmem %s2, %s422
        %p424 = pneg %p118
        %p425 = pneg %p115
        %p426 = scmp.lt.s32.totalorder %s36, 1
        %s427 = scalar_select %p426, %s36, 1
        %s428 = scalar_lea.vmem %s3, %s427
        %p429 = pneg %p144
        %p430 = pneg %p141
        %p431 = scmp.lt.s32.totalorder %s36, 1
        %s432 = scalar_select %p431, %s36, 1
        %s433 = scalar_lea.vmem %s4, %s432
        %p434 = pneg %p170
        %p435 = pneg %p167
        %p436 = pneg %p191
        %p437 = pneg %p188
        %p438 = pneg %p212
        %p439 = pneg %p209
        %p440 = pneg %p233
        %p441 = pneg %p230
        %p442 = pneg %p259
        %p443 = pneg %p256
        %s444 = sand.u32 %s246, 1
        %s445 = scalar_lea.sflag [#allocation5], %s444
        %s446 = sand.u32 %s246, 1
        %s447 = smul.addr %s446, 8
        %s448 = scalar_lea.vmem [#allocation6], %s447
        %p449 = pneg %p285
        %p450 = pneg %p282
        %p451 = scmp.lt.s32.totalorder %s35, 1
        %s452 = scalar_select %p451, %s35, 1
        %s453 = smul.addr %s452, 2
        %s454 = smul.addr %s453, 8
        %s455 = scalar_lea.vmem %s9, %s454
        %p456 = pneg %p311
        %p457 = pneg %p308
        %s458 = sand.u32 %s298, 1
        %s459 = scalar_lea.sflag [#allocation8], %s458
        %s460 = sand.u32 %s298, 1
        %s461 = smul.addr %s460, 4
        %s462 = scalar_lea.vmem [#allocation7], %s461
        %p463 = scmp.lt.s32.totalorder %s35, 1
        %s464 = scalar_select %p463, %s35, 1
        %s465 = smul.addr %s464, 8
        %s466 = scalar_lea.vmem %s1, %s465
        %p467 = scmp.lt.s32.totalorder %s35, 1
        %s468 = scalar_select %p467, %s35, 1
        %s469 = smul.addr %s468, 2
        %s470 = smul.addr %s469, 8
        %s471 = scalar_lea.vmem %s2, %s470
        %p472 = scmp.lt.s32.totalorder %s36, 1
        %s473 = scalar_select %p472, %s36, 1
        %s474 = scalar_lea.vmem %s3, %s473
        %p475 = scmp.lt.s32.totalorder %s36, 1
        %s476 = scalar_select %p475, %s36, 1
        %s477 = scalar_lea.vmem %s4, %s476
        %p478 = scmp.lt.s32.totalorder %s35, 1
        %s479 = scalar_select %p478, %s35, 1
        %s480 = smul.addr %s479, 2
        %s481 = smul.addr %s480, 8
        %s482 = scalar_lea.vmem %s9, %s481
        %v484 = vld [vmem:[%s466] sm:$0xff]
        %v485 = vld [vmem:[%s474] sm:$0x1]
        %v486 = vld [vmem:[%s477] sm:$0x1]
        %v488 = vperm.slane %v485, 0
        %491 = vset.pattern.permute.xlu0 0
        %492 = vperm.xlu0 %491, %v484
        %v493 = vpop.permute.xlu0 %492
        %vm495 = vcmp.ge.f32.partialorder %v488, %v493
        %496 = vset.pattern.permute.xlu0 2
        %497 = vperm.xlu0 %496, %v484
        %v498 = vpop.permute.xlu0 %497
        %vm500 = vcmp.lt.f32.partialorder %v488, %v498
        %vm501 = vmand %vm495, %vm500
        %v503 = vperm.slane %v486, 0
        %505 = vset.pattern.permute.xlu0 1
        %506 = vperm.xlu0 %505, %v484
        %v507 = vpop.permute.xlu0 %506
        %vm509 = vcmp.ge.f32.partialorder %v503, %v507
        %vm510 = vmand %vm501, %vm509
        %511 = vset.pattern.permute.xlu0 3
        %512 = vperm.xlu0 %511, %v484
        %v513 = vpop.permute.xlu0 %512
        %vm515 = vcmp.lt.f32.partialorder %v503, %v513
        %vm516 = vmand %vm510, %vm515
        %v517 = vsel %vm516, 1, 0
        %v518 = vcvt.s32.f32 %v517
        %v519 = vpack.c.bf16 %v518, %v518
        %v520 = vld [vmem:[%s400] sm:$0xf]
        %v521 = vld [vmem:[%s400 + $0x4] sm:$0xf]
        %v522 = vld [vmem:[%s400 + $0x8] sm:$0xf]
        %v523 = vld [vmem:[%s400 + $0xc] sm:$0xf]
        %v528 = vunpack.c.l.b16 %v520
        %v529 = vunpack.c.l.b16 %v521
        %v530 = vunpack.c.l.b16 %v522
        %v531 = vunpack.c.l.b16 %v523
        %v532 = vpack.c.b16 %v529, %v528
        %v533 = vpack.c.b16 %v531, %v530
        %536 = vmatpush.bf16.xpose.msra.mxu0 0
        %537 = vmatpush.bf16.xpose.msra.mxu0 0
        %538 = vmatpush.bf16.xpose.msra.mxu0 0
        %539 = vmatpush.bf16.xpose.msra.mxu0 0
        %540 = vmatpush.bf16.xpose.msra.mxu0 0
        %541 = vmatpush.bf16.xpose.msra.mxu0 0
        %542 = vmatpush.bf16.xpose.msra.mxu0 %v533
        %543 = vmatpush.bf16.xpose.msra.mxu0 %v532
        %544 = vmatmul.bf16.gmra.mxu0 %v519
        %v545 = vpop.f32.mrf.mxu0
        %v546 = vadd.f32 0.0, %v545
        %v547 = vpop.f32.mrf.mxu0
        %548 = vdwg.mxu0
        %p549 = scmp.eq.s32.totalorder %s36, 0
        // Predicated region
        $region57: #{tpu_custom_call.1} parent=51 // pred_check
          %p550 = pneg %p549
        $region58: #{tpu_custom_call.1} parent=51 // pred_check_branch
          %552 = sbr.rel (%p550) target = $region60
        $region59: #{tpu_custom_call.1} parent=51 // pred_region
          %vm553 = vcmask 261120
          %554 = vst.msk [vmem:[#allocation2] sm:$0xff] %vm553, 0.0
        $region60: #{tpu_custom_call.1} parent=51 // pred_fallthru
          _
        %v555 = vld [vmem:[#allocation2] sm:$0xff]
        %v556 = vadd.f32 %v555, %v546
        %vm557 = vcmask 261120
        %558 = vst.msk [vmem:[#allocation2] sm:$0xff] %vm557, %v556
        %p559 = scmp.eq.s32.totalorder %s36, 1
        // Predicated region
        $region61: #{tpu_custom_call.1} parent=51 // pred_check
          %p560 = pneg %p559
        $region62: #{tpu_custom_call.1} parent=51 // pred_check_branch
          %562 = sbr.rel (%p560) target = $region64
        $region63: #{tpu_custom_call.1} parent=51 // pred_region
          %v563 = vceil.f32 %v484
          %v564 = vmax.f32 %v563, 0.0
          %v565 = vmin.f32 %v564, 16.0
          %567 = vrot.lane.b32.xlu0 %v565, 2
          %v568 = vpop.permute.xlu0 %567
          %v570 = vsub.f32 %v565, %v568
          %v571 = vmax.f32 %v570, 0.0
          %573 = vrot.lane.b32.xlu0 %v571, 127
          %v574 = vpop.permute.xlu0 %573
          %v576 = vmul.f32 %v571, %v574
          %v577 = vmax.f32 %v576, 1.0
          %v578 = vld [vmem:[#allocation2] sm:$0xff]
          %v579 = vrcp.pop %v577
          %v580 = vmul.f32 %v577, %v579
          %v581 = vsub.f32 1.0, %v580
          %v582 = vmul.f32 %v579, %v581
          %v583 = vadd.f32 %v579, %v582
          %vm584 = vweird.f32 %v577
          %vm585 = vweird.f32 %v579
          %vm586 = vmor %vm584, %vm585
          %v587 = vsel %vm586, %v579, %v583
          %v588 = vand.u32 2147483647, %v577
          %vm589 = vcmp.eq.f32.partialorder %v588, 8.507059e+37
          %v590 = vand.u32 %v577, 2147483648
          %v591 = vor.u32 1.1754944e-38, %v590
          %v592 = vsel %vm589, %v591, %v587
          %v593 = vmul.f32 1.0, %v592
          %595 = vset.pattern.permute.xlu0 2
          %596 = vperm.xlu0 %595, %v593
          %v597 = vpop.permute.xlu0 %596
          %v599 = vmul.f32 %v578, %v597
          %v600 = vpack.c.bf16 %v599, %v599
          %vm601 = vcmask 257024
          %602 = vst.msk [vmem:[%s462] sm:$0xf] %vm601, %v600
          %v603 = vld [vmem:[%s5] sm:$0xff]
          %v604 = vld [vmem:[%s5 + $0x8] sm:$0xf]
          %v605 = vld [vmem:[%s5 + $0xc] sm:$0xff]
          %v606 = vld [vmem:[%s5 + $0x14] sm:$0xf]
          %v607 = vld [vmem:[%s5 + $0x18] sm:$0xff]
          %v608 = vld [vmem:[%s5 + $0x20] sm:$0xf]
          %v609 = vld [vmem:[%s5 + $0x24] sm:$0xff]
          %v610 = vld [vmem:[%s5 + $0x2c] sm:$0xf]
          %v619 = vunpack.c.l.b16 %v603
          %v620 = vunpack.c.h.b16 %v603
          %v621 = vunpack.c.l.b16 %v604
          %v622 = vunpack.c.l.b16 %v605
          %v623 = vunpack.c.h.b16 %v605
          %v624 = vunpack.c.l.b16 %v606
          %v625 = vunpack.c.l.b16 %v607
          %v626 = vunpack.c.h.b16 %v607
          %v627 = vunpack.c.l.b16 %v608
          %v628 = vunpack.c.l.b16 %v609
          %v629 = vunpack.c.h.b16 %v609
          %v630 = vunpack.c.l.b16 %v610
          %v631 = vpack.c.b16 %v622, %v619
          %v632 = vpack.c.b16 %v623, %v620
          %v633 = vpack.c.b16 %v624, %v621
          %v634 = vpack.c.b16 %v628, %v625
          %v635 = vpack.c.b16 %v629, %v626
          %v636 = vpack.c.b16 %v630, %v627
          %v644 = vsel %vm557, %v600, 0
          %646 = vmatpush.bf16.msra.mxu0 0
          %647 = vmatpush.bf16.msra.mxu0 0
          %648 = vmatpush.bf16.msra.mxu0 0
          %649 = vmatpush.bf16.msra.mxu0 0
          %650 = vmatpush.bf16.msra.mxu0 0
          %651 = vmatpush.bf16.msra.mxu0 0
          %652 = vmatpush.bf16.msra.mxu0 %v634
          %653 = vmatpush.bf16.msra.mxu0 %v631
          %654 = vmatmul.bf16.gmra.mxu0 %v644
          %v655 = vpop.f32.mrf.mxu0
          %v656 = vadd.f32 0.0, %v655
          %v657 = vpop.f32.mrf.mxu0
          %658 = vdwg.mxu0
          %659 = vmatpush.bf16.msra.mxu0 0
          %660 = vmatpush.bf16.msra.mxu0 0
          %661 = vmatpush.bf16.msra.mxu0 0
          %662 = vmatpush.bf16.msra.mxu0 0
          %663 = vmatpush.bf16.msra.mxu0 0
          %664 = vmatpush.bf16.msra.mxu0 0
          %665 = vmatpush.bf16.msra.mxu0 %v635
          %666 = vmatpush.bf16.msra.mxu0 %v632
          %667 = vmatmul.bf16.gmra.mxu0 %v644
          %v668 = vpop.f32.mrf.mxu0
          %v669 = vadd.f32 0.0, %v668
          %v670 = vpop.f32.mrf.mxu0
          %671 = vdwg.mxu0
          %672 = vmatpush.bf16.msra.mxu0 0
          %673 = vmatpush.bf16.msra.mxu0 0
          %674 = vmatpush.bf16.msra.mxu0 0
          %675 = vmatpush.bf16.msra.mxu0 0
          %676 = vmatpush.bf16.msra.mxu0 0
          %677 = vmatpush.bf16.msra.mxu0 0
          %678 = vmatpush.bf16.msra.mxu0 %v636
          %679 = vmatpush.bf16.msra.mxu0 %v633
          %680 = vmatmul.bf16.gmra.mxu0 %v644
          %v681 = vpop.f32.mrf.mxu0
          %v682 = vadd.f32 0.0, %v681
          %v683 = vpop.f32.mrf.mxu0
          %684 = vdwg.mxu0
          %v685 = vld [vmem:[%s6] sm:$0x1]
          %v687 = vperm.slane %v685, 0
          %v689 = vadd.f32 %v656, %v687
          %690 = vst [vmem:[%s448] sm:$0xff] %v689
          %v691 = vpack.c.bf16 %v669, %v669
          %v692 = vpack.c.bf16 %v682, %v682
          %v693 = vld [vmem:[%s471] sm:$0xff]
          %v694 = vld [vmem:[%s471 + $0x8] sm:$0xf]
          %v695 = vlaneseq
          %v696 = vand.u32 %v695, 127
          %697 = vset.pattern.permute.xlu0 0
          %698 = vperm.xlu0 %697, %v693
          %v699 = vpop.permute.xlu0 %698
          %700 = vset.pattern.permute.xlu0 0
          %701 = vperm.xlu0 %700, %v694
          %v702 = vpop.permute.xlu0 %701
          %vm703 = vcmp.eq.s32.totalorder %v696, %v699
          %vm704 = vcmp.eq.s32.totalorder %v696, %v702
          %v705 = vadd.s32 %v693, 8
          %v706 = vadd.s32 %v694, 8
          %707 = vset.pattern.permute.xlu0 1
          %708 = vperm.xlu0 %707, %v705
          %v709 = vpop.permute.xlu0 %708
          %710 = vset.pattern.permute.xlu0 1
          %711 = vperm.xlu0 %710, %v706
          %v712 = vpop.permute.xlu0 %711
          %vm713 = vcmp.eq.s32.totalorder %v696, %v709
          %vm714 = vcmp.eq.s32.totalorder %v696, %v712
          %vm715 = vmor %vm703, %vm713
          %vm716 = vmor %vm704, %vm714
          %v717 = vsel %vm715, 1, 0
          %v718 = vsel %vm716, 1, 0
          %v719 = vcvt.s32.f32 %v717
          %v720 = vcvt.s32.f32 %v718
          %v721 = vpack.c.bf16 %v719, %v719
          %v722 = vpack.c.bf16 %v720, %v720
          %v723 = vld [vmem:[%s7] sm:$0x1]
          %v725 = vperm.slane %v723, 0
          %v729 = vunpack.c.l.b16 %v721
          %v730 = vunpack.c.l.b16 %v722
          %v731 = vpack.c.b16 %v730, %v729
          %v734 = vunpack.c.l.b16 %v691
          %v735 = vunpack.c.l.b16 %v692
          %v736 = vpack.c.b16 %v735, %v734
          %vm738 = vcmask 130048
          %v740 = vsel %vm738, %v731, 0
          %742 = vmatpush.bf16.msra.mxu0 0
          %743 = vmatpush.bf16.msra.mxu0 0
          %744 = vmatpush.bf16.msra.mxu0 0
          %745 = vmatpush.bf16.msra.mxu0 0
          %746 = vmatpush.bf16.msra.mxu0 0
          %747 = vmatpush.bf16.msra.mxu0 0
          %748 = vmatpush.bf16.msra.mxu0 0
          %749 = vmatpush.bf16.msra.mxu0 %v736
          %750 = vmatmul.bf16.gmra.mxu0 %v740
          %v751 = vpop.f32.mrf.mxu0
          %v752 = vadd.f32 %v725, %v751
          %v753 = vpop.f32.mrf.mxu0
          %v754 = vadd.f32 %v725, %v753
          %755 = vdwg.mxu0
          %756 = vst [vmem:[%s482] sm:$0xff] %v752
          %757 = vst [vmem:[%s482 + $0x8] sm:$0xf] %v754
        $region64: #{tpu_custom_call.1} parent=51 // pred_fallthru
          _
        %s758 = sand.u32 %s246, 1
        %s759 = scalar_lea.sflag [#allocation5], %s758
        %s760 = sand.u32 %s246, 1
        %s761 = smul.addr %s760, 8
        %s762 = scalar_lea.vmem [#allocation6], %s761
        %p763 = scmp.lt.s32.totalorder %s35, 1
        %s764 = scalar_select %p763, %s35, 1
        %s765 = smul.addr %s764, 2
        %s766 = smul.addr %s765, 8
        %s767 = scalar_lea.vmem %s9, %s766
        %s768 = sand.u32 %s298, 1
        %s769 = scalar_lea.sflag [#allocation8], %s768
        %s770 = sand.u32 %s298, 1
        %s771 = smul.addr %s770, 4
        %s772 = scalar_lea.vmem [#allocation7], %s771
        // Predicated region
        $region65: #{tpu_custom_call.1} parent=51 // pred_check
          %p773 = pneg %p256
        $region66: #{tpu_custom_call.1} parent=51 // pred_check_branch
          %775 = sbr.rel (%p773) target = $region68
        $region67: #{tpu_custom_call.1} parent=51 // pred_region
          %777 = vsyncadd %s759, 0
          %s778 = smul.addr %s35, 8
          %s779 = scalar_lea.hbm %s8, %s778
          %s781 = sshll.u32 %s762, 4
          %s782 = int_to_ptr.vmem [resolvable:$true] %s781
          %s783 = sshll.u32 %s779, 4
          %s784 = int_to_ptr.hbm [resolvable:$true] %s783
          %786 = dma.vmem_to_hbm [thread:$0]  %s782, 128, %s784, %s759
        $region68: #{tpu_custom_call.1} parent=51 // pred_fallthru
          _
        // Predicated region
        $region69: #{tpu_custom_call.1} parent=51 // pred_check
          %p787 = pneg %p282
        $region70: #{tpu_custom_call.1} parent=51 // pred_check_branch
          %789 = sbr.rel (%p787) target = $region72
        $region71: #{tpu_custom_call.1} parent=51 // pred_region
          _
        $region72: #{tpu_custom_call.1} parent=51 // pred_fallthru
          _
        // Predicated region
        $region73: #{tpu_custom_call.1} parent=51 // pred_check
          %p790 = pneg %p308
        $region74: #{tpu_custom_call.1} parent=51 // pred_check_branch
          %792 = sbr.rel (%p790) target = $region76
        $region75: #{tpu_custom_call.1} parent=51 // pred_region
          %794 = vsyncadd %s769, 0
          %s795 = smul.addr %s35, 4
          %s796 = scalar_lea.hbm %s10, %s795
          %s798 = sshll.u32 %s772, 4
          %s799 = int_to_ptr.vmem [resolvable:$true] %s798
          %s800 = sshll.u32 %s796, 4
          %s801 = int_to_ptr.hbm [resolvable:$true] %s800
          %803 = dma.vmem_to_hbm [thread:$0]  %s799, 64, %s801, %s769
        $region76: #{tpu_custom_call.1} parent=51 // pred_fallthru
          _
      $region52: #{tpu_custom_call.1} parent=5 // pred_fallthru
        _
      %p804 = scmp.le.s32.totalorder 2, %s26
      // Predicated region
      $region77: #{tpu_custom_call.1} parent=5 // pred_check
        %p805 = pneg %p804
      $region78: #{tpu_custom_call.1} parent=5 // pred_check_branch
        %807 = sbr.rel (%p805) target = $region80
      $region79: #{tpu_custom_call.1} parent=5 // pred_region
        %s808 = ssub.s32 %s26, 2
        // Predicated region
        $region81: #{tpu_custom_call.1} parent=79 // pred_check
          %p809 = pneg %p262
        $region82: #{tpu_custom_call.1} parent=79 // pred_check_branch
          %811 = sbr.rel (%p809) target = $region84
        $region83: #{tpu_custom_call.1} parent=79 // pred_region
          %s812 = sand.u32 %s247, 1
          %s813 = scalar_lea.sflag [#allocation5], %s812
          %s814 = sand.u32 %s247, 1
          %s815 = smul.addr %s814, 8
          %s816 = scalar_lea.vmem [#allocation6], %s815
          %818 = dma.done %s813, 128
        $region84: #{tpu_custom_call.1} parent=79 // pred_fallthru
          _
        // Predicated region
        $region85: #{tpu_custom_call.1} parent=79 // pred_check
          %p819 = pneg %p288
        $region86: #{tpu_custom_call.1} parent=79 // pred_check_branch
          %821 = sbr.rel (%p819) target = $region88
        $region87: #{tpu_custom_call.1} parent=79 // pred_region
          %p822 = scmp.lt.s32.totalorder %s37, 1
          %s823 = scalar_select %p822, %s37, 1
          %s824 = smul.addr %s823, 2
          %s825 = smul.addr %s824, 8
          %s826 = scalar_lea.vmem %s9, %s825
        $region88: #{tpu_custom_call.1} parent=79 // pred_fallthru
          _
        // Predicated region
        $region89: #{tpu_custom_call.1} parent=79 // pred_check
          %p827 = pneg %p314
        $region90: #{tpu_custom_call.1} parent=79 // pred_check_branch
          %829 = sbr.rel (%p827) target = $region92
        $region91: #{tpu_custom_call.1} parent=79 // pred_region
          %s830 = sand.u32 %s299, 1
          %s831 = scalar_lea.sflag [#allocation8], %s830
          %s832 = sand.u32 %s299, 1
          %s833 = smul.addr %s832, 4
          %s834 = scalar_lea.vmem [#allocation7], %s833
          %836 = dma.done %s831, 64
        $region92: #{tpu_custom_call.1} parent=79 // pred_fallthru
          _
      $region80: #{tpu_custom_call.1} parent=5 // pred_fallthru
        _
    $region6: #{tpu_custom_call.1} parent=1 // loop_footer
      %s30 = sadd.s32 1, %s26
    $region7: #{tpu_custom_call.1} parent=1 // loop_footer_branch
      %25 = sbr.rel target = $region3
    $region8: #{tpu_custom_call.1} parent=1 // loop_exit
      _
    %837 = vsyncpa [#allocation4], 1
    %s838 = scalar_lea.sflag [#allocation4], 1
    %839 = vsyncpa %s838, 1
    %840 = vsyncpa [#allocation5], 1
    %s841 = scalar_lea.sflag [#allocation5], 1
    %842 = vsyncpa %s841, 1
    %843 = vsyncpa [#allocation8], 1
    %s844 = scalar_lea.sflag [#allocation8], 1
    %845 = vsyncpa %s844, 1

</llo_original>
